<compile_context>
chip_gen: v6e
topology: v6e:2x2x1
jax: 0.10.0
libtpu: 0.0.40
codegen_flags: <defaults>
</compile_context>

<pallas_src>
import jax
import jax.numpy as jnp
from jax.experimental import pallas as pl
from jax.experimental.pallas import tpu as pltpu


def _round_up(x, m):
    return ((x + m - 1) // m) * m


def gru_seq_kernel(x_ref, h0_ref, wx_ref, wh_ref, b_ref, out_ref, h_acc):
    """One (batch_tile, timestep) grid point of the fused-sequence GRU.

    x_ref : (1, tb, I)   current timestep's inputs (streamed per grid step)
    h0_ref: (tb, Hp)     initial hidden state, lane-padded, float32
    wx_ref: (I, 3*Hp)    [W_ir | W_iz | W_in]^T   (VMEM-resident, compute dtype)
    wh_ref: (Hp, 3*Hp)   [W_hr | W_hz | W_hn]^T   (VMEM-resident, compute dtype)
    b_ref : (2, 3*Hp)    row 0 = [b_ir+b_hr | b_iz+b_hz | b_in], row 1 = [0|0|b_hn]
    out_ref:(tb, Hp)     final hidden state (written on the last timestep)
    h_acc : (tb, Hp)     float32 VMEM scratch carrying h across timesteps
    """
    t = pl.program_id(1)

    @pl.when(t == 0)
    def _init():
        h_acc[...] = h0_ref[...]

    hp = h_acc.shape[-1]                      # padded hidden width (multiple of 128)
    cdt = wx_ref.dtype                        # MXU compute dtype (bf16 by default)

    x = x_ref[0].astype(cdt)                  # (tb, I)
    h = h_acc[...]                            # (tb, Hp) float32 carried state
    b = b_ref[...]

    gx = jnp.dot(x, wx_ref[...], preferred_element_type=jnp.float32) + b[0:1, :]
    gh = jnp.dot(h.astype(cdt), wh_ref[...], preferred_element_type=jnp.float32) + b[1:2, :]

    r = jax.nn.sigmoid(gx[:, 0 * hp:1 * hp] + gh[:, 0 * hp:1 * hp])
    z = jax.nn.sigmoid(gx[:, 1 * hp:2 * hp] + gh[:, 1 * hp:2 * hp])
    n = jnp.tanh(gx[:, 2 * hp:3 * hp] + r * gh[:, 2 * hp:3 * hp])

    h_new = n + z * (h - n)                   # == (1 - z) * n + z * h  (torch.nn.GRUCell)
    h_acc[...] = h_new

    @pl.when(t == pl.num_programs(1) - 1)
    def _finalize():
        out_ref[...] = h_new.astype(out_ref.dtype)


def pack_gru_params(params, *, weight_dtype=jnp.bfloat16):
    """One-time packing of PyTorch-layout GRUCell params (hoisted out of forward).

    params: weight_ih (3H, I), weight_hh (3H, H), bias_ih (3H,), bias_hh (3H,),
            PyTorch gate order (r, z, n) along the 3H axis.
    Returns row-split, 128-lane-aligned weights:
        w_x: (I,  3*Hp) columns [r | z | n] from W_ih      (weight_dtype)
        w_h: (Hp, 3*Hp) columns [r | z | n] from W_hh      (weight_dtype)
        b  : (2,  3*Hp) row 0 = [b_ir+b_hr | b_iz+b_hz | b_in], row 1 = [0|0|b_hn] (f32)
    """
    w_ih = jnp.asarray(params["weight_ih"], jnp.float32)   # (3H, I)
    w_hh = jnp.asarray(params["weight_hh"], jnp.float32)   # (3H, H)
    b_ih = jnp.asarray(params["bias_ih"], jnp.float32)     # (3H,)
    b_hh = jnp.asarray(params["bias_hh"], jnp.float32)     # (3H,)

    three_h, input_size = w_ih.shape
    H = three_h // 3
    Hp = _round_up(H, 128)

    w_x = jnp.zeros((input_size, 3 * Hp), jnp.float32)
    w_h = jnp.zeros((Hp, 3 * Hp), jnp.float32)
    for g in range(3):                                      # gate order r, z, n
        w_x = w_x.at[:, g * Hp:g * Hp + H].set(w_ih[g * H:(g + 1) * H].T)
        w_h = w_h.at[:H, g * Hp:g * Hp + H].set(w_hh[g * H:(g + 1) * H].T)

    b = jnp.zeros((2, 3 * Hp), jnp.float32)
    b = b.at[0, 0:H].set(b_ih[0:H] + b_hh[0:H])                       # r (fused)
    b = b.at[0, Hp:Hp + H].set(b_ih[H:2 * H] + b_hh[H:2 * H])         # z (fused)
    b = b.at[0, 2 * Hp:2 * Hp + H].set(b_ih[2 * H:3 * H])             # i_n
    b = b.at[1, 2 * Hp:2 * Hp + H].set(b_hh[2 * H:3 * H])             # h_n

    return {
        "w_x": w_x.astype(weight_dtype),
        "w_h": w_h.astype(weight_dtype),
        "b": b,                                # biases stay float32
        "input_size": input_size,
        "hidden_size": H,
        "hidden_padded": Hp,
    }


def encoder_gru_sequence(x_seq, h_init, packed, *, batch_tile=None):
    """Run the GRUCell over a whole time-major sequence in ONE pallas_call.

    Args:
        x_seq:  (T, B, input_size)  time-major inputs.
        h_init: (B, hidden_size)    initial hidden state.
        packed: output of pack_gru_params (call once, reuse).
        batch_tile: rows per grid program; must divide B and be a multiple of 8
            (or equal B).  Default B (single tile) is right for single-TC
            v5e/v6e; on v7x pass B // 2 (needs B >= 16) so the "parallel"
            batch axis shards across both TensorCores.
    Returns:
        (B, hidden_size) float32 final hidden state.
    """
    T, B, I = x_seq.shape
    H = packed["hidden_size"]
    Hp = packed["hidden_padded"]
    if packed["input_size"] != I:
        raise ValueError("x feature dim does not match packed params")
    if h_init.shape != (B, H):
        raise ValueError("h_init shape mismatch")

    tb = batch_tile if batch_tile is not None else B
    if B % tb != 0:
        raise ValueError(f"batch {B} must be divisible by batch_tile {tb}")
    if tb != B and tb % 8 != 0:
        raise ValueError(f"batch_tile {tb} must be a multiple of 8 (or equal B)")

    h0 = h_init.astype(jnp.float32)
    if Hp != H:
        h0 = jnp.pad(h0, ((0, 0), (0, Hp - H)))            # once per sequence

    w_x, w_h, b = packed["w_x"], packed["w_h"], packed["b"]

    # Explicit VMEM budget: single-buffered weights + double-buffered activations.
    wbytes = jnp.dtype(w_x.dtype).itemsize
    resident = (w_x.size + w_h.size) * wbytes + 8 * 3 * Hp * 4
    streamed = 2 * (tb * I * x_seq.dtype.itemsize + 2 * tb * Hp * 4) + tb * Hp * 4
    vmem_limit = int(min(max(2 * (resident + streamed), 16 * 1024 * 1024),
                         64 * 1024 * 1024))

    def resident_spec(shape):
        # Constant block index -> loaded once, stays VMEM-resident; Buffered(1)
        # avoids allocating a useless second buffer for it.
        return pl.BlockSpec(shape, lambda bt, t: (0, 0),
                            pipeline_mode=pl.Buffered(1))

    out = pl.pallas_call(
        gru_seq_kernel,
        out_shape=jax.ShapeDtypeStruct((B, Hp), jnp.float32),
        grid_spec=pltpu.PrefetchScalarGridSpec(
            num_scalar_prefetch=0,
            grid=(B // tb, T),                                       # time innermost
            in_specs=[
                pl.BlockSpec((1, tb, I), lambda bt, t: (t, bt, 0)),  # x_t tile (streamed)
                pl.BlockSpec((tb, Hp), lambda bt, t: (bt, 0)),       # h0 tile
                resident_spec((I, 3 * Hp)),                          # w_x
                resident_spec((Hp, 3 * Hp)),                         # w_h
                resident_spec((2, 3 * Hp)),                          # biases
            ],
            out_specs=pl.BlockSpec((tb, Hp), lambda bt, t: (bt, 0)), # lane-dense output
            scratch_shapes=[pltpu.VMEM((tb, Hp), jnp.float32)],      # h carried here
        ),
        compiler_params=pltpu.CompilerParams(
            dimension_semantics=("parallel", "arbitrary"),
            vmem_limit_bytes=vmem_limit,
        ),
    )(x_seq, h0, w_x, w_h, b)

    return out[:, :H] if Hp != H else out


def encoder_gru_forward(embedded_input, h_init, packed, *, batch_tile=None):
    """EncoderGRU.forward: a single GRUCell step (the T == 1 fused-sequence case)."""
    return encoder_gru_sequence(embedded_input[None], h_init, packed,
                                batch_tile=batch_tile)


# ----------------------------- pure-JAX reference -----------------------------

def gru_cell_reference(x, h, params):
    wih, whh = params["weight_ih"], params["weight_hh"]
    bih, bhh = params["bias_ih"], params["bias_hh"]
    H = h.shape[-1]
    gi = x @ wih.T + bih
    gh = h @ whh.T + bhh
    i_r, i_z, i_n = gi[:, :H], gi[:, H:2 * H], gi[:, 2 * H:]
    h_r, h_z, h_n = gh[:, :H], gh[:, H:2 * H], gh[:, 2 * H:]
    r = jax.nn.sigmoid(i_r + h_r)
    z = jax.nn.sigmoid(i_z + h_z)
    n = jnp.tanh(i_n + r * h_n)
    return (1.0 - z) * n + z * h


def gru_sequence_reference(x_seq, h, params):
    for t in range(x_seq.shape[0]):
        h = gru_cell_reference(x_seq[t], h, params)
    return h


def _make_params(key, I, H):
    kw, kh, kbi, kbh = jax.random.split(key, 4)
    bound = 1.0 / jnp.sqrt(jnp.float32(H))
    return {
        "weight_ih": jax.random.uniform(kw, (3 * H, I), jnp.float32, -bound, bound),
        "weight_hh": jax.random.uniform(kh, (3 * H, H), jnp.float32, -bound, bound),
        "bias_ih": jax.random.uniform(kbi, (3 * H,), jnp.float32, -bound, bound),
        "bias_hh": jax.random.uniform(kbh, (3 * H,), jnp.float32, -bound, bound),
    }


if __name__ == "__main__":
    key = jax.random.PRNGKey(0)
    k_p, k_x, k_h, k_p2, k_x2, k_h2 = jax.random.split(key, 6)

    # Module-consistent shapes: input_embed_size=32, enc_hidden_size=32, batch=8.
    B, I, H, T = 8, 32, 32, 6
    params = _make_params(k_p, I, H)
    x_seq = jax.random.normal(k_x, (T, B, I), jnp.float32)     # time-major
    h_init = jax.random.normal(k_h, (B, H), jnp.float32)

    # 1) Single GRUCell step (the module's forward), f32 weights, tight check.
    packed_f32 = pack_gru_params(params, weight_dtype=jnp.float32)
    step = jax.jit(lambda x, h: encoder_gru_forward(x, h, packed_f32))
    h1 = step(x_seq[0], h_init)
    jax.block_until_ready(h1)
    h1_ref = gru_cell_reference(x_seq[0], h_init, params)
    assert h1.shape == (B, H)
    assert jnp.allclose(h1, h1_ref, atol=1e-4, rtol=1e-4), "single-step f32 mismatch"

    # 2) Whole sequence fused into one pallas_call, f32 weights, tight check.
    seq = jax.jit(lambda x, h: encoder_gru_sequence(x, h, packed_f32))
    hT = seq(x_seq, h_init)
    jax.block_until_ready(hT)
    hT_ref = gru_sequence_reference(x_seq, h_init, params)
    assert jnp.allclose(hT, hT_ref, atol=1e-4, rtol=1e-4), "sequence f32 mismatch"

    # 3) Default bf16 MXU path (bf16 weights, x/h cast in-kernel), loose check.
    packed_bf16 = pack_gru_params(params)                      # weight_dtype=bfloat16
    seq_bf16 = jax.jit(lambda x, h: encoder_gru_sequence(x, h, packed_bf16))
    hT_bf16 = seq_bf16(x_seq, h_init)
    jax.block_until_ready(hT_bf16)
    assert jnp.allclose(hT_bf16, hT_ref, atol=5e-2, rtol=5e-2), "sequence bf16 mismatch"

    # 4) Multi-tile batch grid (exercises the "parallel" batch axis, e.g. v7x)
    #    with a padded hidden size (H=160 -> Hp=256).
    B2, I2, H2, T2 = 16, 48, 160, 4
    params2 = _make_params(k_p2, I2, H2)
    x2 = jax.random.normal(k_x2, (T2, B2, I2), jnp.float32)
    h2 = jax.random.normal(k_h2, (B2, H2), jnp.float32)
    packed2 = pack_gru_params(params2, weight_dtype=jnp.float32)
    seq2 = jax.jit(lambda x, h: encoder_gru_sequence(x, h, packed2, batch_tile=8))
    out2 = seq2(x2, h2)
    jax.block_until_ready(out2)
    ref2 = gru_sequence_reference(x2, h2, params2)
    assert out2.shape == (B2, H2)
    assert jnp.allclose(out2, ref2, atol=1e-4, rtol=1e-4), "multi-tile mismatch"

    print("KERNEL_OK")
</pallas_src>

<mosaic_0001>
module attributes {stable_mosaic.version = 11 : i64} {
  func.func @gru_seq_kernel(%arg0: i32, %arg1: i32, %arg2: memref<1x8x32xf32, #tpu.memory_space<vmem>>, %arg3: memref<8x128xf32, #tpu.memory_space<vmem>>, %arg4: memref<32x384xf32, #tpu.memory_space<vmem>>, %arg5: memref<128x384xf32, #tpu.memory_space<vmem>>, %arg6: memref<2x384xf32, #tpu.memory_space<vmem>>, %arg7: memref<8x128xf32, #tpu.memory_space<vmem>>, %arg8: memref<8x128xf32, #tpu.memory_space<vmem>>) attributes {dimension_semantics = [#tpu.dimension_semantics<parallel>, #tpu.dimension_semantics<arbitrary>], iteration_bounds = array<i64: 1, 1>, scalar_prefetch = 0 : i64, scratch_operands = 1 : i64, tpu.core_type = #tpu.core_type<tc>, window_params = [{transform_indices = @transform_0, window_bounds = array<i64: 1, 8, 32>}, {transform_indices = @transform_1, window_bounds = array<i64: 8, 128>}, {pipeline_mode = #tpu.pipeline_mode<synchronous>, transform_indices = @transform_2, window_bounds = array<i64: 32, 384>}, {pipeline_mode = #tpu.pipeline_mode<synchronous>, transform_indices = @transform_3, window_bounds = array<i64: 128, 384>}, {pipeline_mode = #tpu.pipeline_mode<synchronous>, transform_indices = @transform_4, window_bounds = array<i64: 2, 384>}, {transform_indices = @transform_5, window_bounds = array<i64: 8, 128>}]} {
    %c0_i32 = arith.constant 0 : i32
    %0 = arith.cmpi eq, %arg1, %c0_i32 : i32
    %1 = arith.extui %0 : i1 to i32
    %c0_i32_0 = arith.constant 0 : i32
    %2 = arith.cmpi ne, %1, %c0_i32_0 : i32
    scf.if %2 {
      %c0_18 = arith.constant 0 : index
      %c0_19 = arith.constant 0 : index
      %45 = vector.load %arg3[%c0_18, %c0_19] : memref<8x128xf32, #tpu.memory_space<vmem>>, vector<8x128xf32>
      %c0_20 = arith.constant 0 : index
      %c0_21 = arith.constant 0 : index
      %46 = vector.load %arg8[%c0_20, %c0_21] : memref<8x128xf32, #tpu.memory_space<vmem>>, vector<8x128xf32>
      tpu.vector_store %arg8[%c0_20, %c0_21], %45 {strides = array<i32>} : memref<8x128xf32, #tpu.memory_space<vmem>>, vector<8x128xf32>,
    } else {
    }
    %c0 = arith.constant 0 : index
    %c0_1 = arith.constant 0 : index
    %c0_2 = arith.constant 0 : index
    %3 = vector.load %arg2[%c0, %c0_1, %c0_2] : memref<1x8x32xf32, #tpu.memory_space<vmem>>, vector<1x8x32xf32>
    %4 = vector.shape_cast %3 : vector<1x8x32xf32> to vector<8x32xf32>
    %c0_3 = arith.constant 0 : index
    %c0_4 = arith.constant 0 : index
    %5 = vector.load %arg8[%c0_3, %c0_4] : memref<8x128xf32, #tpu.memory_space<vmem>>, vector<8x128xf32>
    %c0_5 = arith.constant 0 : index
    %c0_6 = arith.constant 0 : index
    %6 = vector.load %arg6[%c0_5, %c0_6] : memref<2x384xf32, #tpu.memory_space<vmem>>, vector<2x384xf32>
    %c0_7 = arith.constant 0 : index
    %c0_8 = arith.constant 0 : index
    %7 = vector.load %arg4[%c0_7, %c0_8] : memref<32x384xf32, #tpu.memory_space<vmem>>, vector<32x384xf32>
    %cst = arith.constant dense<0.000000e+00> : vector<8x384xf32>
    %8 = tpu.matmul %4, %7, %cst {dimension_numbers = #tpu.dot_dimension_numbers<[1], [0], [0], [1], [0, 0, 1, 1], [], []>} : vector<8x32xf32>, vector<32x384xf32>, vector<8x384xf32> -> vector<8x384xf32>
    %9 = vector.extract_strided_slice %6 {offsets = [0, 0], sizes = [1, 384], strides = [1, 1]} : vector<2x384xf32> to vector<1x384xf32>
    %10 = vector.broadcast %9 : vector<1x384xf32> to vector<8x384xf32>
    %11 = arith.addf %8, %10 : vector<8x384xf32>
    %c0_9 = arith.constant 0 : index
    %c0_10 = arith.constant 0 : index
    %12 = vector.load %arg5[%c0_9, %c0_10] : memref<128x384xf32, #tpu.memory_space<vmem>>, vector<128x384xf32>
    %cst_11 = arith.constant dense<0.000000e+00> : vector<8x384xf32>
    %13 = tpu.matmul %5, %12, %cst_11 {dimension_numbers = #tpu.dot_dimension_numbers<[1], [0], [0], [1], [0, 0, 1, 1], [], []>} : vector<8x128xf32>, vector<128x384xf32>, vector<8x384xf32> -> vector<8x384xf32>
    %14 = vector.extract_strided_slice %6 {offsets = [1, 0], sizes = [1, 384], strides = [1, 1]} : vector<2x384xf32> to vector<1x384xf32>
    %15 = vector.broadcast %14 : vector<1x384xf32> to vector<8x384xf32>
    %16 = arith.addf %13, %15 : vector<8x384xf32>
    %17 = vector.extract_strided_slice %11 {offsets = [0, 0], sizes = [8, 128], strides = [1, 1]} : vector<8x384xf32> to vector<8x128xf32>
    %18 = vector.extract_strided_slice %16 {offsets = [0, 0], sizes = [8, 128], strides = [1, 1]} : vector<8x384xf32> to vector<8x128xf32>
    %19 = arith.addf %17, %18 : vector<8x128xf32>
    %20 = arith.negf %19 : vector<8x128xf32>
    %21 = math.exp %20 : vector<8x128xf32>
    %cst_12 = arith.constant 1.000000e+00 : f32
    %22 = vector.broadcast %cst_12 : f32 to vector<8x128xf32>
    %23 = arith.addf %22, %21 : vector<8x128xf32>
    %24 = arith.divf %22, %23 : vector<8x128xf32>
    %25 = vector.extract_strided_slice %11 {offsets = [0, 128], sizes = [8, 128], strides = [1, 1]} : vector<8x384xf32> to vector<8x128xf32>
    %26 = vector.extract_strided_slice %16 {offsets = [0, 128], sizes = [8, 128], strides = [1, 1]} : vector<8x384xf32> to vector<8x128xf32>
    %27 = arith.addf %25, %26 : vector<8x128xf32>
    %28 = arith.negf %27 : vector<8x128xf32>
    %29 = math.exp %28 : vector<8x128xf32>
    %cst_13 = arith.constant 1.000000e+00 : f32
    %30 = vector.broadcast %cst_13 : f32 to vector<8x128xf32>
    %31 = arith.addf %30, %29 : vector<8x128xf32>
    %32 = arith.divf %30, %31 : vector<8x128xf32>
    %33 = vector.extract_strided_slice %11 {offsets = [0, 256], sizes = [8, 128], strides = [1, 1]} : vector<8x384xf32> to vector<8x128xf32>
    %34 = vector.extract_strided_slice %16 {offsets = [0, 256], sizes = [8, 128], strides = [1, 1]} : vector<8x384xf32> to vector<8x128xf32>
    %35 = arith.mulf %24, %34 : vector<8x128xf32>
    %36 = arith.addf %33, %35 : vector<8x128xf32>
    %37 = math.tanh %36 : vector<8x128xf32>
    %38 = arith.subf %5, %37 : vector<8x128xf32>
    %39 = arith.mulf %32, %38 : vector<8x128xf32>
    %40 = arith.addf %37, %39 : vector<8x128xf32>
    %c0_14 = arith.constant 0 : index
    %c0_15 = arith.constant 0 : index
    %41 = vector.load %arg8[%c0_14, %c0_15] : memref<8x128xf32, #tpu.memory_space<vmem>>, vector<8x128xf32>
    tpu.vector_store %arg8[%c0_14, %c0_15], %40 {strides = array<i32>} : memref<8x128xf32, #tpu.memory_space<vmem>>, vector<8x128xf32>,
    %c0_i32_16 = arith.constant 0 : i32
    %42 = arith.cmpi eq, %arg1, %c0_i32_16 : i32
    %43 = arith.extui %42 : i1 to i32
    %c0_i32_17 = arith.constant 0 : i32
    %44 = arith.cmpi ne, %43, %c0_i32_17 : i32
    scf.if %44 {
      %c0_18 = arith.constant 0 : index
      %c0_19 = arith.constant 0 : index
      %45 = vector.load %arg7[%c0_18, %c0_19] : memref<8x128xf32, #tpu.memory_space<vmem>>, vector<8x128xf32>
      tpu.vector_store %arg7[%c0_18, %c0_19], %40 {strides = array<i32>} : memref<8x128xf32, #tpu.memory_space<vmem>>, vector<8x128xf32>,
    } else {
    }
    return
  }
  func.func @transform_0(%arg0: i32, %arg1: i32) -> (i32, i32, i32) {
    %c0_i32 = arith.constant 0 : i32
    %c0_i32_0 = arith.constant 0 : i32
    return %arg1, %arg0, %c0_i32 : i32, i32, i32
  }
  func.func @transform_1(%arg0: i32, %arg1: i32) -> (i32, i32) {
    %c0_i32 = arith.constant 0 : i32
    %c0_i32_0 = arith.constant 0 : i32
    return %arg0, %c0_i32 : i32, i32
  }
  func.func @transform_2(%arg0: i32, %arg1: i32) -> (i32, i32) {
    %c0_i32 = arith.constant 0 : i32
    %c0_i32_0 = arith.constant 0 : i32
    %c0_i32_1 = arith.constant 0 : i32
    return %c0_i32, %c0_i32_0 : i32, i32
  }
  func.func @transform_3(%arg0: i32, %arg1: i32) -> (i32, i32) {
    %c0_i32 = arith.constant 0 : i32
    %c0_i32_0 = arith.constant 0 : i32
    %c0_i32_1 = arith.constant 0 : i32
    return %c0_i32, %c0_i32_0 : i32, i32
  }
  func.func @transform_4(%arg0: i32, %arg1: i32) -> (i32, i32) {
    %c0_i32 = arith.constant 0 : i32
    %c0_i32_0 = arith.constant 0 : i32
    %c0_i32_1 = arith.constant 0 : i32
    return %c0_i32, %c0_i32_0 : i32, i32
  }
  func.func @transform_5(%arg0: i32, %arg1: i32) -> (i32, i32) {
    %c0_i32 = arith.constant 0 : i32
    %c0_i32_0 = arith.constant 0 : i32
    return %arg0, %c0_i32 : i32, i32
  }
}

</mosaic_0001>

<llo_original>
// kernel: _lambda_.1
$region0: #{_lambda_.1}
  #allocation0 [shape = 'u32[]', space=smem, size = 0x4, offset = 0x4, fixed_abs, tag = 'smem constant byte address 0x4 - core index']
  #allocation1 [shape = 'u32[144,128]{1,0:T(1,128)}', space=vmem, size = 0x12000, scoped, tag = 'internal scratch']
  #allocation2 [shape = 'f32[8,128]{1,0:T(8,128)}', space=vmem, size = 0x1000, scoped, tag = 'scratch operand']
  %s0 = inlined_call_operand.vmem [shape: f32[1,8,32], index: 0, kind: input, shape index: {}]
  %s1 = inlined_call_operand.vmem [shape: f32[8,128], index: 1, kind: input, shape index: {}]
  %s2 = inlined_call_operand.hbm [shape: f32[32,384], index: 2, kind: input, shape index: {}]
  %s3 = inlined_call_operand.hbm [shape: f32[128,384], index: 3, kind: input, shape index: {}]
  %s4 = inlined_call_operand.vmem [shape: f32[2,384], index: 4, kind: input, shape index: {}]
  %s5 = inlined_call_operand.hbm [shape: f32[8,128], index: 5, kind: output, shape index: {}]
  %s6 = sld [smem:[#allocation0]]
  $region46: #{_lambda_.1} parent=0
    _
  %s8 = ssub.s32 1, %s6
  %s9 = scalar_select 0, %s8, %s6
  $region1: #{_lambda_.1} parent=0
    #allocation3 [shape = 'u8[49152]{0}', space=vmem, size = 0xc000, scoped, tag = 'input window, operand 2, single buffered']
    #allocation4 [shape = 's32[1]{0}', space=sflag, size = 0x4, scoped, tag = 'scoped memory for _lambda_.1']
    #allocation5 [shape = 's32[1]{0}', space=sflag, size = 0x4, scoped, tag = 'scoped memory for _lambda_.1']
    #allocation6 [shape = 'u8[196608]{0}', space=vmem, size = 0x30000, scoped, tag = 'input window, operand 3, single buffered']
    #allocation7 [shape = 's32[1]{0}', space=sflag, size = 0x4, scoped, tag = 'scoped memory for _lambda_.1']
    #allocation8 [shape = 'u8[4096]{0}', space=vmem, size = 0x1000, scoped, tag = 'output window, operand 0, single buffered']
    %10 = vsyncpa [#allocation4], 0
    %11 = vsyncpa [#allocation7], 0
    %12 = vsyncpa [#allocation5], 0
    // Predicated region
    $region2: #{_lambda_.1} parent=1 // pred_check
      _
    $region3: #{_lambda_.1} parent=1 // pred_check_branch
      %14 = sbr.rel (0) target = $region5
    $region4: #{_lambda_.1} parent=1 // pred_region
      _
    $region5: #{_lambda_.1} parent=1 // pred_fallthru
      _
    // Predicated region
    $region6: #{_lambda_.1} parent=1 // pred_check
      _
    $region7: #{_lambda_.1} parent=1 // pred_check_branch
      %16 = sbr.rel (0) target = $region9
    $region8: #{_lambda_.1} parent=1 // pred_region
      _
    $region9: #{_lambda_.1} parent=1 // pred_fallthru
      _
    // Predicated region
    $region10: #{_lambda_.1} parent=1 // pred_check
      _
    $region11: #{_lambda_.1} parent=1 // pred_check_branch
      %18 = sbr.rel (0) target = $region13
    $region12: #{_lambda_.1} parent=1 // pred_region
      %s20 = ssub.s32 1536, 1536
      %21 = vsyncadd [#allocation4], %s20
      %s22 = sshll.u32 [#allocation3], 4
      %s23 = int_to_ptr.vmem [resolvable:$true] %s22
      %28 = dma.hbm_to_vmem [thread:$0]  %s2, 1536, %s23, [#allocation4], 384, 384, 24
    $region13: #{_lambda_.1} parent=1 // pred_fallthru
      _
    // Predicated region
    $region14: #{_lambda_.1} parent=1 // pred_check
      _
    $region15: #{_lambda_.1} parent=1 // pred_check_branch
      %30 = sbr.rel (0) target = $region17
    $region16: #{_lambda_.1} parent=1 // pred_region
      %s32 = ssub.s32 6144, 6144
      %33 = vsyncadd [#allocation7], %s32
      %s34 = sshll.u32 [#allocation6], 4
      %s35 = int_to_ptr.vmem [resolvable:$true] %s34
      %40 = dma.hbm_to_vmem [thread:$0]  %s3, 6144, %s35, [#allocation7], 384, 384, 24
    $region17: #{_lambda_.1} parent=1 // pred_fallthru
      _
    // Predicated region
    $region18: #{_lambda_.1} parent=1 // pred_check
      _
    $region19: #{_lambda_.1} parent=1 // pred_check_branch
      %42 = sbr.rel (0) target = $region21
    $region20: #{_lambda_.1} parent=1 // pred_region
      _
    $region21: #{_lambda_.1} parent=1 // pred_fallthru
      _
    // Predicated region
    $region22: #{_lambda_.1} parent=1 // pred_check
      _
    $region23: #{_lambda_.1} parent=1 // pred_check_branch
      %44 = sbr.rel (0) target = $region25
    $region24: #{_lambda_.1} parent=1 // pred_region
      %45 = dma.done [#allocation4], 1536
    $region25: #{_lambda_.1} parent=1 // pred_fallthru
      _
    // Predicated region
    $region26: #{_lambda_.1} parent=1 // pred_check
      _
    $region27: #{_lambda_.1} parent=1 // pred_check_branch
      %47 = sbr.rel (0) target = $region29
    $region28: #{_lambda_.1} parent=1 // pred_region
      %48 = dma.done [#allocation7], 6144
    $region29: #{_lambda_.1} parent=1 // pred_fallthru
      _
    %p49 = scmp.eq.s32.totalorder 0, 0
    // Predicated region
    $region30: #{_lambda_.1} parent=1 // pred_check
      %p50 = pneg %p49
    $region31: #{_lambda_.1} parent=1 // pred_check_branch
      %52 = sbr.rel (%p50) target = $region33
    $region32: #{_lambda_.1} parent=1 // pred_region
      %v53 = vld [vmem:[%s1] sm:$0xff]
      %54 = vst [vmem:[#allocation2] sm:$0xff] %v53
    $region33: #{_lambda_.1} parent=1 // pred_fallthru
      _
    %v55 = vld [vmem:[%s0] sm:$0xff]
    %v56 = vld [vmem:[#allocation2] sm:$0xff]
    %v57 = vld [vmem:[%s4] sm:$0x3f]
    %v58 = vld [vmem:[#allocation3] sm:$0xff]
    %v59 = vld [vmem:[#allocation3 + $0x8] sm:$0xff]
    %v60 = vld [vmem:[#allocation3 + $0x10] sm:$0xff]
    %v61 = vld [vmem:[#allocation3 + $0x18] sm:$0xff]
    %v62 = vld [vmem:[#allocation3 + $0x20] sm:$0xff]
    %v63 = vld [vmem:[#allocation3 + $0x28] sm:$0xff]
    %v64 = vld [vmem:[#allocation3 + $0x30] sm:$0xff]
    %v65 = vld [vmem:[#allocation3 + $0x38] sm:$0xff]
    %v66 = vld [vmem:[#allocation3 + $0x40] sm:$0xff]
    %v67 = vld [vmem:[#allocation3 + $0x48] sm:$0xff]
    %v68 = vld [vmem:[#allocation3 + $0x50] sm:$0xff]
    %v69 = vld [vmem:[#allocation3 + $0x58] sm:$0xff]
    %v71 = vlaneseq
    %v72 = vshrl.u32 %v71, 7
    %v73 = vsub.s32 0, %v72
    %v74 = vrot.slane %v57, %v73
    %v75 = vlaneseq
    %v76 = vshrl.u32 %v75, 7
    %v77 = vsub.s32 2, %v76
    %v78 = vrot.slane %v57, %v77
    %v79 = vlaneseq
    %v80 = vshrl.u32 %v79, 7
    %v81 = vsub.s32 4, %v80
    %v82 = vrot.slane %v57, %v81
    %v86 = vlaneseq
    %v87 = vshrl.u32 %v86, 7
    %v88 = vsub.s32 0, %v87
    %v89 = vrot.slane %v74, %v88
    %v90 = vlaneseq
    %v91 = vshrl.u32 %v90, 7
    %v92 = vsub.s32 0, %v91
    %v93 = vrot.slane %v78, %v92
    %v94 = vlaneseq
    %v95 = vshrl.u32 %v94, 7
    %v96 = vsub.s32 0, %v95
    %v97 = vrot.slane %v82, %v96
    %vm98 = vcmask 261120
    %v100 = vsel %vm98, %v55, 0
    %102 = vmatprep.subr.mxu0 0.0
    %103 = vmatpush1.msra.mxu0 0.0
    %104 = vmatprep.subr.mxu0 0.0
    %105 = vmatpush1.msra.mxu0 0.0
    %106 = vmatprep.subr.mxu0 0.0
    %107 = vmatpush1.msra.mxu0 0.0
    %108 = vmatprep.subr.mxu0 0.0
    %109 = vmatpush1.msra.mxu0 0.0
    %110 = vmatprep.subr.mxu0 0.0
    %111 = vmatpush1.msra.mxu0 0.0
    %112 = vmatprep.subr.mxu0 0.0
    %113 = vmatpush1.msra.mxu0 0.0
    %114 = vmatprep.subr.mxu0 0.0
    %115 = vmatpush1.msra.mxu0 0.0
    %116 = vmatprep.subr.mxu0 0.0
    %117 = vmatpush1.msra.mxu0 0.0
    %118 = vmatprep.subr.mxu0 0.0
    %119 = vmatpush1.msra.mxu0 0.0
    %120 = vmatprep.subr.mxu0 0.0
    %121 = vmatpush1.msra.mxu0 0.0
    %122 = vmatprep.subr.mxu0 0.0
    %123 = vmatpush1.msra.mxu0 0.0
    %124 = vmatprep.subr.mxu0 0.0
    %125 = vmatpush1.msra.mxu0 0.0
    %126 = vmatprep.subr.mxu0 %v68
    %127 = vmatpush1.msra.mxu0 %v67
    %128 = vmatprep.subr.mxu0 %v65
    %129 = vmatpush1.msra.mxu0 %v64
    %130 = vmatprep.subr.mxu0 %v62
    %131 = vmatpush1.msra.mxu0 %v61
    %132 = vmatprep.subr.mxu0 %v59
    %133 = vmatpush1.msra.mxu0 %v58
    %134 = vmatprep.subr.mxu0 0.0
    %135 = vmatpush2.msra.mxu0 0.0
    %136 = vmatprep.subr.mxu0 0.0
    %137 = vmatpush2.msra.mxu0 0.0
    %138 = vmatprep.subr.mxu0 0.0
    %139 = vmatpush2.msra.mxu0 0.0
    %140 = vmatprep.subr.mxu0 0.0
    %141 = vmatpush2.msra.mxu0 0.0
    %142 = vmatprep.subr.mxu0 0.0
    %143 = vmatpush2.msra.mxu0 0.0
    %144 = vmatprep.subr.mxu0 0.0
    %145 = vmatpush2.msra.mxu0 0.0
    %146 = vmatprep.subr.mxu0 0.0
    %147 = vmatpush2.msra.mxu0 0.0
    %148 = vmatprep.subr.mxu0 0.0
    %149 = vmatpush2.msra.mxu0 0.0
    %150 = vmatprep.subr.mxu0 0.0
    %151 = vmatpush2.msra.mxu0 0.0
    %152 = vmatprep.subr.mxu0 0.0
    %153 = vmatpush2.msra.mxu0 0.0
    %154 = vmatprep.subr.mxu0 0.0
    %155 = vmatpush2.msra.mxu0 0.0
    %156 = vmatprep.subr.mxu0 0.0
    %157 = vmatpush2.msra.mxu0 0.0
    %158 = vmatprep.subr.mxu0 0.0
    %159 = vmatpush2.msra.mxu0 0.0
    %160 = vmatprep.subr.mxu0 0.0
    %161 = vmatpush2.msra.mxu0 0.0
    %162 = vmatprep.subr.mxu0 0.0
    %163 = vmatpush2.msra.mxu0 0.0
    %164 = vmatprep.subr.mxu0 0.0
    %165 = vmatpush2.msra.mxu0 0.0
    %166 = vmatprep.mubr.f32.mxu0 0.0
    %167 = vmatmul.mubr.f32.gmra.mxu0 %v100
    %v168 = vpop.f32.mrf.mxu0
    %v169 = vadd.f32 %v89, %v168
    %v170 = vpop.f32.mrf.mxu0
    %v171 = vadd.f32 %v93, %v170
    %172 = vdwg.mxu0
    %173 = vmatprep.subr.mxu0 0.0
    %174 = vmatpush1.msra.mxu0 0.0
    %175 = vmatprep.subr.mxu0 0.0
    %176 = vmatpush1.msra.mxu0 0.0
    %177 = vmatprep.subr.mxu0 0.0
    %178 = vmatpush1.msra.mxu0 0.0
    %179 = vmatprep.subr.mxu0 0.0
    %180 = vmatpush1.msra.mxu0 0.0
    %181 = vmatprep.subr.mxu0 0.0
    %182 = vmatpush1.msra.mxu0 0.0
    %183 = vmatprep.subr.mxu0 0.0
    %184 = vmatpush1.msra.mxu0 0.0
    %185 = vmatprep.subr.mxu0 0.0
    %186 = vmatpush1.msra.mxu0 0.0
    %187 = vmatprep.subr.mxu0 0.0
    %188 = vmatpush1.msra.mxu0 0.0
    %189 = vmatprep.subr.mxu0 0.0
    %190 = vmatpush1.msra.mxu0 0.0
    %191 = vmatprep.subr.mxu0 0.0
    %192 = vmatpush1.msra.mxu0 0.0
    %193 = vmatprep.subr.mxu0 0.0
    %194 = vmatpush1.msra.mxu0 0.0
    %195 = vmatprep.subr.mxu0 0.0
    %196 = vmatpush1.msra.mxu0 0.0
    %197 = vmatprep.subr.mxu0 0.0
    %198 = vmatpush1.msra.mxu0 %v69
    %199 = vmatprep.subr.mxu0 0.0
    %200 = vmatpush1.msra.mxu0 %v66
    %201 = vmatprep.subr.mxu0 0.0
    %202 = vmatpush1.msra.mxu0 %v63
    %203 = vmatprep.subr.mxu0 0.0
    %204 = vmatpush1.msra.mxu0 %v60
    %205 = vmatprep.subr.mxu0 0.0
    %206 = vmatpush2.msra.mxu0 0.0
    %207 = vmatprep.subr.mxu0 0.0
    %208 = vmatpush2.msra.mxu0 0.0
    %209 = vmatprep.subr.mxu0 0.0
    %210 = vmatpush2.msra.mxu0 0.0
    %211 = vmatprep.subr.mxu0 0.0
    %212 = vmatpush2.msra.mxu0 0.0
    %213 = vmatprep.subr.mxu0 0.0
    %214 = vmatpush2.msra.mxu0 0.0
    %215 = vmatprep.subr.mxu0 0.0
    %216 = vmatpush2.msra.mxu0 0.0
    %217 = vmatprep.subr.mxu0 0.0
    %218 = vmatpush2.msra.mxu0 0.0
    %219 = vmatprep.subr.mxu0 0.0
    %220 = vmatpush2.msra.mxu0 0.0
    %221 = vmatprep.subr.mxu0 0.0
    %222 = vmatpush2.msra.mxu0 0.0
    %223 = vmatprep.subr.mxu0 0.0
    %224 = vmatpush2.msra.mxu0 0.0
    %225 = vmatprep.subr.mxu0 0.0
    %226 = vmatpush2.msra.mxu0 0.0
    %227 = vmatprep.subr.mxu0 0.0
    %228 = vmatpush2.msra.mxu0 0.0
    %229 = vmatprep.subr.mxu0 0.0
    %230 = vmatpush2.msra.mxu0 0.0
    %231 = vmatprep.subr.mxu0 0.0
    %232 = vmatpush2.msra.mxu0 0.0
    %233 = vmatprep.subr.mxu0 0.0
    %234 = vmatpush2.msra.mxu0 0.0
    %235 = vmatprep.subr.mxu0 0.0
    %236 = vmatpush2.msra.mxu0 0.0
    %237 = vmatprep.mubr.f32.mxu0 0.0
    %238 = vmatmul.mubr.f32.gmra.mxu0 %v100
    %v239 = vpop.f32.mrf.mxu0
    %v240 = vadd.f32 %v97, %v239
    %v241 = vpop.f32.mrf.mxu0
    %242 = vdwg.mxu0
    %v243 = vld [vmem:[#allocation6] sm:$0xff]
    %v244 = vld [vmem:[#allocation6 + $0x8] sm:$0xff]
    %v245 = vld [vmem:[#allocation6 + $0x10] sm:$0xff]
    %v246 = vld [vmem:[#allocation6 + $0x18] sm:$0xff]
    %v247 = vld [vmem:[#allocation6 + $0x20] sm:$0xff]
    %v248 = vld [vmem:[#allocation6 + $0x28] sm:$0xff]
    %v249 = vld [vmem:[#allocation6 + $0x30] sm:$0xff]
    %v250 = vld [vmem:[#allocation6 + $0x38] sm:$0xff]
    %v251 = vld [vmem:[#allocation6 + $0x40] sm:$0xff]
    %v252 = vld [vmem:[#allocation6 + $0x48] sm:$0xff]
    %v253 = vld [vmem:[#allocation6 + $0x50] sm:$0xff]
    %v254 = vld [vmem:[#allocation6 + $0x58] sm:$0xff]
    %v255 = vld [vmem:[#allocation6 + $0x60] sm:$0xff]
    %v256 = vld [vmem:[#allocation6 + $0x68] sm:$0xff]
    %v257 = vld [vmem:[#allocation6 + $0x70] sm:$0xff]
    %v258 = vld [vmem:[#allocation6 + $0x78] sm:$0xff]
    %v259 = vld [vmem:[#allocation6 + $0x80] sm:$0xff]
    %v260 = vld [vmem:[#allocation6 + $0x88] sm:$0xff]
    %v261 = vld [vmem:[#allocation6 + $0x90] sm:$0xff]
    %v262 = vld [vmem:[#allocation6 + $0x98] sm:$0xff]
    %v263 = vld [vmem:[#allocation6 + $0xa0] sm:$0xff]
    %v264 = vld [vmem:[#allocation6 + $0xa8] sm:$0xff]
    %v265 = vld [vmem:[#allocation6 + $0xb0] sm:$0xff]
    %v266 = vld [vmem:[#allocation6 + $0xb8] sm:$0xff]
    %v267 = vld [vmem:[#allocation6 + $0xc0] sm:$0xff]
    %v268 = vld [vmem:[#allocation6 + $0xc8] sm:$0xff]
    %v269 = vld [vmem:[#allocation6 + $0xd0] sm:$0xff]
    %v270 = vld [vmem:[#allocation6 + $0xd8] sm:$0xff]
    %v271 = vld [vmem:[#allocation6 + $0xe0] sm:$0xff]
    %v272 = vld [vmem:[#allocation6 + $0xe8] sm:$0xff]
    %v273 = vld [vmem:[#allocation6 + $0xf0] sm:$0xff]
    %v274 = vld [vmem:[#allocation6 + $0xf8] sm:$0xff]
    %v275 = vld [vmem:[#allocation6 + $0x100] sm:$0xff]
    %v276 = vld [vmem:[#allocation6 + $0x108] sm:$0xff]
    %v277 = vld [vmem:[#allocation6 + $0x110] sm:$0xff]
    %v278 = vld [vmem:[#allocation6 + $0x118] sm:$0xff]
    %v279 = vld [vmem:[#allocation6 + $0x120] sm:$0xff]
    %v280 = vld [vmem:[#allocation6 + $0x128] sm:$0xff]
    %v281 = vld [vmem:[#allocation6 + $0x130] sm:$0xff]
    %v282 = vld [vmem:[#allocation6 + $0x138] sm:$0xff]
    %v283 = vld [vmem:[#allocation6 + $0x140] sm:$0xff]
    %v284 = vld [vmem:[#allocation6 + $0x148] sm:$0xff]
    %v285 = vld [vmem:[#allocation6 + $0x150] sm:$0xff]
    %v286 = vld [vmem:[#allocation6 + $0x158] sm:$0xff]
    %v287 = vld [vmem:[#allocation6 + $0x160] sm:$0xff]
    %v288 = vld [vmem:[#allocation6 + $0x168] sm:$0xff]
    %v289 = vld [vmem:[#allocation6 + $0x170] sm:$0xff]
    %v290 = vld [vmem:[#allocation6 + $0x178] sm:$0xff]
    %v291 = vlaneseq
    %v292 = vshrl.u32 %v291, 7
    %v293 = vsub.s32 1, %v292
    %v294 = vrot.slane %v57, %v293
    %v295 = vlaneseq
    %v296 = vshrl.u32 %v295, 7
    %v297 = vsub.s32 3, %v296
    %v298 = vrot.slane %v57, %v297
    %v299 = vlaneseq
    %v300 = vshrl.u32 %v299, 7
    %v301 = vsub.s32 5, %v300
    %v302 = vrot.slane %v57, %v301
    %v306 = vlaneseq
    %v307 = vshrl.u32 %v306, 7
    %v308 = vsub.s32 1, %v307
    %v309 = vrot.slane %v294, %v308
    %v310 = vlaneseq
    %v311 = vshrl.u32 %v310, 7
    %v312 = vsub.s32 1, %v311
    %v313 = vrot.slane %v298, %v312
    %v314 = vlaneseq
    %v315 = vshrl.u32 %v314, 7
    %v316 = vsub.s32 1, %v315
    %v317 = vrot.slane %v302, %v316
    %318 = vmatprep.subr.mxu0 %v289
    %319 = vmatpush1.msra.mxu0 %v288
    %320 = vmatprep.subr.mxu0 %v286
    %321 = vmatpush1.msra.mxu0 %v285
    %322 = vmatprep.subr.mxu0 %v283
    %323 = vmatpush1.msra.mxu0 %v282
    %324 = vmatprep.subr.mxu0 %v280
    %325 = vmatpush1.msra.mxu0 %v279
    %326 = vmatprep.subr.mxu0 %v277
    %327 = vmatpush1.msra.mxu0 %v276
    %328 = vmatprep.subr.mxu0 %v274
    %329 = vmatpush1.msra.mxu0 %v273
    %330 = vmatprep.subr.mxu0 %v271
    %331 = vmatpush1.msra.mxu0 %v270
    %332 = vmatprep.subr.mxu0 %v268
    %333 = vmatpush1.msra.mxu0 %v267
    %334 = vmatprep.subr.mxu0 %v265
    %335 = vmatpush1.msra.mxu0 %v264
    %336 = vmatprep.subr.mxu0 %v262
    %337 = vmatpush1.msra.mxu0 %v261
    %338 = vmatprep.subr.mxu0 %v259
    %339 = vmatpush1.msra.mxu0 %v258
    %340 = vmatprep.subr.mxu0 %v256
    %341 = vmatpush1.msra.mxu0 %v255
    %342 = vmatprep.subr.mxu0 %v253
    %343 = vmatpush1.msra.mxu0 %v252
    %344 = vmatprep.subr.mxu0 %v250
    %345 = vmatpush1.msra.mxu0 %v249
    %346 = vmatprep.subr.mxu0 %v247
    %347 = vmatpush1.msra.mxu0 %v246
    %348 = vmatprep.subr.mxu0 %v244
    %349 = vmatpush1.msra.mxu0 %v243
    %350 = vmatprep.subr.mxu0 0.0
    %351 = vmatpush2.msra.mxu0 0.0
    %352 = vmatprep.subr.mxu0 0.0
    %353 = vmatpush2.msra.mxu0 0.0
    %354 = vmatprep.subr.mxu0 0.0
    %355 = vmatpush2.msra.mxu0 0.0
    %356 = vmatprep.subr.mxu0 0.0
    %357 = vmatpush2.msra.mxu0 0.0
    %358 = vmatprep.subr.mxu0 0.0
    %359 = vmatpush2.msra.mxu0 0.0
    %360 = vmatprep.subr.mxu0 0.0
    %361 = vmatpush2.msra.mxu0 0.0
    %362 = vmatprep.subr.mxu0 0.0
    %363 = vmatpush2.msra.mxu0 0.0
    %364 = vmatprep.subr.mxu0 0.0
    %365 = vmatpush2.msra.mxu0 0.0
    %366 = vmatprep.subr.mxu0 0.0
    %367 = vmatpush2.msra.mxu0 0.0
    %368 = vmatprep.subr.mxu0 0.0
    %369 = vmatpush2.msra.mxu0 0.0
    %370 = vmatprep.subr.mxu0 0.0
    %371 = vmatpush2.msra.mxu0 0.0
    %372 = vmatprep.subr.mxu0 0.0
    %373 = vmatpush2.msra.mxu0 0.0
    %374 = vmatprep.subr.mxu0 0.0
    %375 = vmatpush2.msra.mxu0 0.0
    %376 = vmatprep.subr.mxu0 0.0
    %377 = vmatpush2.msra.mxu0 0.0
    %378 = vmatprep.subr.mxu0 0.0
    %379 = vmatpush2.msra.mxu0 0.0
    %380 = vmatprep.subr.mxu0 0.0
    %381 = vmatpush2.msra.mxu0 0.0
    %382 = vmatprep.mubr.f32.mxu0 0.0
    %383 = vmatmul.mubr.f32.gmra.mxu0 %v56
    %v384 = vpop.f32.mrf.mxu0
    %v385 = vadd.f32 %v309, %v384
    %v386 = vpop.f32.mrf.mxu0
    %v387 = vadd.f32 %v313, %v386
    %388 = vdwg.mxu0
    %389 = vmatprep.subr.mxu0 0.0
    %390 = vmatpush1.msra.mxu0 %v290
    %391 = vmatprep.subr.mxu0 0.0
    %392 = vmatpush1.msra.mxu0 %v287
    %393 = vmatprep.subr.mxu0 0.0
    %394 = vmatpush1.msra.mxu0 %v284
    %395 = vmatprep.subr.mxu0 0.0
    %396 = vmatpush1.msra.mxu0 %v281
    %397 = vmatprep.subr.mxu0 0.0
    %398 = vmatpush1.msra.mxu0 %v278
    %399 = vmatprep.subr.mxu0 0.0
    %400 = vmatpush1.msra.mxu0 %v275
    %401 = vmatprep.subr.mxu0 0.0
    %402 = vmatpush1.msra.mxu0 %v272
    %403 = vmatprep.subr.mxu0 0.0
    %404 = vmatpush1.msra.mxu0 %v269
    %405 = vmatprep.subr.mxu0 0.0
    %406 = vmatpush1.msra.mxu0 %v266
    %407 = vmatprep.subr.mxu0 0.0
    %408 = vmatpush1.msra.mxu0 %v263
    %409 = vmatprep.subr.mxu0 0.0
    %410 = vmatpush1.msra.mxu0 %v260
    %411 = vmatprep.subr.mxu0 0.0
    %412 = vmatpush1.msra.mxu0 %v257
    %413 = vmatprep.subr.mxu0 0.0
    %414 = vmatpush1.msra.mxu0 %v254
    %415 = vmatprep.subr.mxu0 0.0
    %416 = vmatpush1.msra.mxu0 %v251
    %417 = vmatprep.subr.mxu0 0.0
    %418 = vmatpush1.msra.mxu0 %v248
    %419 = vmatprep.subr.mxu0 0.0
    %420 = vmatpush1.msra.mxu0 %v245
    %421 = vmatprep.subr.mxu0 0.0
    %422 = vmatpush2.msra.mxu0 0.0
    %423 = vmatprep.subr.mxu0 0.0
    %424 = vmatpush2.msra.mxu0 0.0
    %425 = vmatprep.subr.mxu0 0.0
    %426 = vmatpush2.msra.mxu0 0.0
    %427 = vmatprep.subr.mxu0 0.0
    %428 = vmatpush2.msra.mxu0 0.0
    %429 = vmatprep.subr.mxu0 0.0
    %430 = vmatpush2.msra.mxu0 0.0
    %431 = vmatprep.subr.mxu0 0.0
    %432 = vmatpush2.msra.mxu0 0.0
    %433 = vmatprep.subr.mxu0 0.0
    %434 = vmatpush2.msra.mxu0 0.0
    %435 = vmatprep.subr.mxu0 0.0
    %436 = vmatpush2.msra.mxu0 0.0
    %437 = vmatprep.subr.mxu0 0.0
    %438 = vmatpush2.msra.mxu0 0.0
    %439 = vmatprep.subr.mxu0 0.0
    %440 = vmatpush2.msra.mxu0 0.0
    %441 = vmatprep.subr.mxu0 0.0
    %442 = vmatpush2.msra.mxu0 0.0
    %443 = vmatprep.subr.mxu0 0.0
    %444 = vmatpush2.msra.mxu0 0.0
    %445 = vmatprep.subr.mxu0 0.0
    %446 = vmatpush2.msra.mxu0 0.0
    %447 = vmatprep.subr.mxu0 0.0
    %448 = vmatpush2.msra.mxu0 0.0
    %449 = vmatprep.subr.mxu0 0.0
    %450 = vmatpush2.msra.mxu0 0.0
    %451 = vmatprep.subr.mxu0 0.0
    %452 = vmatpush2.msra.mxu0 0.0
    %453 = vmatprep.mubr.f32.mxu0 0.0
    %454 = vmatmul.mubr.f32.gmra.mxu0 %v56
    %v455 = vpop.f32.mrf.mxu0
    %v456 = vadd.f32 %v317, %v455
    %v457 = vpop.f32.mrf.mxu0
    %458 = vdwg.mxu0
    %v459 = vadd.f32 %v169, %v385
    %v460 = vxor.u32 %v459, 2147483648
    %v461 = vmul.f32 %v460, 1.442695
    %v462 = vpow.pop %v461
    %v463 = vadd.f32 %v462, 1.0
    %v464 = vrcp.pop %v463
    %v465 = vmul.f32 1.0, %v464
    %v466 = vadd.f32 %v171, %v387
    %v467 = vxor.u32 %v466, 2147483648
    %v468 = vmul.f32 %v467, 1.442695
    %v469 = vpow.pop %v468
    %v470 = vadd.f32 %v469, 1.0
    %v471 = vrcp.pop %v470
    %v472 = vmul.f32 1.0, %v471
    %v473 = vmul.f32 %v465, %v456
    %v474 = vadd.f32 %v240, %v473
    %v475 = vtanh.pop %v474
    %v476 = vsub.f32 %v56, %v475
    %v477 = vmul.f32 %v472, %v476
    %v478 = vadd.f32 %v475, %v477
    %479 = vst [vmem:[#allocation2] sm:$0xff] %v478
    // Predicated region
    $region34: #{_lambda_.1} parent=1 // pred_check
      %p480 = pneg %p49
    $region35: #{_lambda_.1} parent=1 // pred_check_branch
      %482 = sbr.rel (%p480) target = $region37
    $region36: #{_lambda_.1} parent=1 // pred_region
      %483 = vst [vmem:[#allocation8] sm:$0xff] %v478
    $region37: #{_lambda_.1} parent=1 // pred_fallthru
      _
    // Predicated region
    $region38: #{_lambda_.1} parent=1 // pred_check
      _
    $region39: #{_lambda_.1} parent=1 // pred_check_branch
      %485 = sbr.rel (0) target = $region41
    $region40: #{_lambda_.1} parent=1 // pred_region
      %s487 = ssub.s32 128, 128
      %488 = vsyncadd [#allocation5], %s487
      %s490 = sshll.u32 [#allocation8], 4
      %s491 = int_to_ptr.vmem [resolvable:$true] %s490
      %493 = dma.vmem_to_hbm [thread:$0]  %s491, 128, %s5, [#allocation5]
    $region41: #{_lambda_.1} parent=1 // pred_fallthru
      _
    // Predicated region
    $region42: #{_lambda_.1} parent=1 // pred_check
      _
    $region43: #{_lambda_.1} parent=1 // pred_check_branch
      %495 = sbr.rel (0) target = $region45
    $region44: #{_lambda_.1} parent=1 // pred_region
      %496 = dma.done [#allocation5], 128
    $region45: #{_lambda_.1} parent=1 // pred_fallthru
      _
    %497 = vsyncpa [#allocation4], 1
    %498 = vsyncpa [#allocation7], 1
    %499 = vsyncpa [#allocation5], 1

</llo_original>
